<compile_context>
chip_gen: v7x
topology: tpu7x:2x2x1
jax: 0.10.0
libtpu: 0.0.40
codegen_flags: <defaults>
</compile_context>

<pallas_src>
import functools

import jax
import jax.numpy as jnp
from jax.experimental import pallas as pl
from jax.experimental.pallas import tpu as pltpu

HID_SIZE = 256


def _round_up(n, m):
    return ((n + m - 1) // m) * m


def _cdiv(a, b):
    return (a + b - 1) // b


def _sac_actor_kernel(x_ref,
                      w1c_ref, b1c_ref,          # fused layer-1: (obs, 2H), (1, 2H)
                      mw2_ref, mb2_ref,          # mu layer-2:    (H, H), (1, H)
                      sw2_ref, sb2_ref,          # sigma layer-2: (H, H), (1, H)
                      w3m_ref, b3m_ref,          # mu layer-3 (lane-padded): (H, A_pad), (1, A_pad)
                      w3s_ref, b3s_ref,          # sigma layer-3 (lane-padded)
                      out_ref,                   # (TB, 2*A_pad): [ mu | sigma ]
                      *, a_pad, compute_dtype):
    H = HID_SIZE
    x = x_ref[...]

    # Layer 1: both branches in one MXU pass (N = 2H); bias + ReLU in f32.
    h1 = jnp.dot(x, w1c_ref[...], preferred_element_type=jnp.float32) + b1c_ref[...]
    h1 = jnp.maximum(h1, 0.0)
    h1_mu = h1[:, :H].astype(compute_dtype)   # 128-lane aligned slice: no shuffle
    h1_sg = h1[:, H:].astype(compute_dtype)

    # Layer 2 per branch (f32 accumulate, f32 bias/ReLU, cast back for layer 3).
    h2_mu = jnp.maximum(
        jnp.dot(h1_mu, mw2_ref[...], preferred_element_type=jnp.float32) + mb2_ref[...],
        0.0).astype(compute_dtype)
    h2_sg = jnp.maximum(
        jnp.dot(h1_sg, sw2_ref[...], preferred_element_type=jnp.float32) + sb2_ref[...],
        0.0).astype(compute_dtype)

    # Layer 3: lane-padded weights -> each branch fills a 128-aligned half of
    # the output slab; both stores are full-width, unmasked.
    o_mu = jnp.dot(h2_mu, w3m_ref[...], preferred_element_type=jnp.float32) + b3m_ref[...]
    o_sg = jnp.dot(h2_sg, w3s_ref[...], preferred_element_type=jnp.float32) + b3s_ref[...]

    out_ref[:, :a_pad] = o_mu.astype(out_ref.dtype)
    # torch.clamp(sigma, min=1e-6, max=1) applied to the sigma half only (f32).
    out_ref[:, a_pad:] = jnp.clip(o_sg, 1e-6, 1.0).astype(out_ref.dtype)


def _chip_defaults():
    """Generation-aware (tb_max, vmem_limit_bytes, num_tensorcores)."""
    try:
        kind = jax.devices()[0].device_kind.lower()
    except Exception:
        kind = ""
    if "v7" in kind:
        # 2 TCs/chip, 64 MiB VMEM per TC: cap the scoped limit, large bf16 tiles.
        return 4096, 48 * 1024 * 1024, 2
    if "v6" in kind:
        # 128 MiB VMEM, 918 TF/s: big tiles amortize the ~0.35 us/step overhead.
        return 4096, 80 * 1024 * 1024, 1
    if "v5 lite" in kind or "v5e" in kind or "v5lite" in kind:
        # 197 TF/s: per-step compute dominates already; modest tiles, but raise
        # the 16 MiB default scoped VMEM limit.
        return 2048, 64 * 1024 * 1024, 1
    return 2048, None, 1


@functools.partial(
    jax.jit,
    static_argnames=("tb_max", "vmem_limit_bytes", "num_cores", "compute_dtype"))
def _sac_actor_forward_impl(x, params, *, tb_max, vmem_limit_bytes, num_cores,
                            compute_dtype):
    B, obs = x.shape
    H = HID_SIZE
    act = params["mu_w3"].shape[1]
    A_pad = _round_up(act, 128)
    cdt = compute_dtype

    # --- host-side weight packing (cheap; fused by XLA around the call) ---
    w1c = jnp.concatenate([params["mu_w1"], params["sigma_w1"]], axis=1).astype(cdt)
    b1c = jnp.concatenate([params["mu_b1"], params["sigma_b1"]], axis=1).astype(jnp.float32)
    mw2 = params["mu_w2"].astype(cdt)
    mb2 = params["mu_b2"].astype(jnp.float32)
    sw2 = params["sigma_w2"].astype(cdt)
    sb2 = params["sigma_b2"].astype(jnp.float32)
    pad3 = ((0, 0), (0, A_pad - act))
    w3m = jnp.pad(params["mu_w3"], pad3).astype(cdt)
    b3m = jnp.pad(params["mu_b3"], pad3).astype(jnp.float32)
    w3s = jnp.pad(params["sigma_w3"], pad3).astype(cdt)
    b3s = jnp.pad(params["sigma_b3"], pad3).astype(jnp.float32)

    # --- batch tiling: sublane-aligned tile, pad B to a multiple of it ---
    B8 = _round_up(B, 8)
    TB = min(tb_max, B8)
    if num_cores > 1 and B8 > 8:
        # Guarantee >= num_cores grid steps so the "parallel" batch axis can be
        # sharded across both TensorCores on megacore parts (v7x).
        TB = min(TB, max(8, _round_up(_cdiv(B8, num_cores), 8)))
    B_pad = _round_up(B, TB)
    xp = x.astype(cdt)
    if B_pad != B:
        xp = jnp.pad(xp, ((0, B_pad - B), (0, 0)))
    grid = (B_pad // TB,)

    const = lambda i: (0, 0)   # weights/biases: same block every step -> VMEM-resident
    in_specs = [
        pl.BlockSpec((TB, obs), lambda i: (i, 0)),
        pl.BlockSpec((obs, 2 * H), const),
        pl.BlockSpec((1, 2 * H), const),
        pl.BlockSpec((H, H), const),
        pl.BlockSpec((1, H), const),
        pl.BlockSpec((H, H), const),
        pl.BlockSpec((1, H), const),
        pl.BlockSpec((H, A_pad), const),
        pl.BlockSpec((1, A_pad), const),
        pl.BlockSpec((H, A_pad), const),
        pl.BlockSpec((1, A_pad), const),
    ]
    out_spec = pl.BlockSpec((TB, 2 * A_pad), lambda i: (i, 0))

    operands = (xp, w1c, b1c, mw2, mb2, sw2, sb2, w3m, b3m, w3s, b3s)
    flops = 2 * B_pad * (obs * 2 * H + 2 * H * H + 2 * H * A_pad)
    bytes_accessed = (sum(int(a.size) * a.dtype.itemsize for a in operands)
                      + B_pad * 2 * A_pad * 4)
    cost = pl.CostEstimate(flops=flops, transcendentals=0,
                           bytes_accessed=bytes_accessed)

    out = pl.pallas_call(
        functools.partial(_sac_actor_kernel, a_pad=A_pad, compute_dtype=cdt),
        out_shape=jax.ShapeDtypeStruct((B_pad, 2 * A_pad), jnp.float32),
        grid=grid,
        in_specs=in_specs,
        out_specs=out_spec,
        compiler_params=pltpu.CompilerParams(
            dimension_semantics=("parallel",),
            vmem_limit_bytes=vmem_limit_bytes),
        cost_estimate=cost,
    )(*operands)

    mu = out[:B, :act]
    sigma = out[:B, A_pad:A_pad + act]
    return mu, sigma


def sac_actor_forward(x, params, *, compute_dtype=jnp.bfloat16):
    """SACActor.forward: returns (mu, sigma) with sigma clamped to [1e-6, 1]."""
    tb_max, vmem_limit_bytes, num_cores = _chip_defaults()
    return _sac_actor_forward_impl(
        x, params, tb_max=tb_max, vmem_limit_bytes=vmem_limit_bytes,
        num_cores=num_cores, compute_dtype=compute_dtype)


def _xavier_uniform(key, fan_in, fan_out):
    # Matches torch.nn.init.xavier_uniform_ (gain=1): U(-a, a), a = sqrt(6/(fi+fo))
    a = jnp.sqrt(6.0 / (fan_in + fan_out))
    return jax.random.uniform(key, (fan_in, fan_out), jnp.float32, -a, a)


def init_sac_actor_params(key, obs_size, act_size):
    """Deterministic init matching SACActor.__init__ (xavier weights, bias=0.01).

    Weights are stored transposed vs PyTorch, i.e. (in, out); biases are (1, out).
    """
    keys = jax.random.split(key, 6)
    dims = [(obs_size, HID_SIZE), (HID_SIZE, HID_SIZE), (HID_SIZE, act_size)]
    params = {}
    for branch, ks in (("mu", keys[:3]), ("sigma", keys[3:])):
        for i, ((fi, fo), k) in enumerate(zip(dims, ks), start=1):
            params[f"{branch}_w{i}"] = _xavier_uniform(k, fi, fo)
            params[f"{branch}_b{i}"] = jnp.full((1, fo), 0.01, jnp.float32)
    return params


def _reference_forward(x, params):
    def mlp(prefix):
        h = jnp.maximum(x @ params[f"{prefix}_w1"] + params[f"{prefix}_b1"], 0.0)
        h = jnp.maximum(h @ params[f"{prefix}_w2"] + params[f"{prefix}_b2"], 0.0)
        return h @ params[f"{prefix}_w3"] + params[f"{prefix}_b3"]
    mu = mlp("mu")
    sigma = jnp.clip(mlp("sigma"), 1e-6, 1.0)
    return mu, sigma


if __name__ == "__main__":
    key = jax.random.PRNGKey(0)
    k_param, k_x = jax.random.split(key)

    obs_size = 16
    act_size = 8
    batch = 8

    params = init_sac_actor_params(k_param, obs_size, act_size)
    x = jax.random.normal(k_x, (batch, obs_size), jnp.float32)

    mu_ref, sigma_ref = _reference_forward(x, params)

    # Default path: bf16 MXU operands, f32 accumulation (loose tolerance).
    mu, sigma = sac_actor_forward(x, params)
    jax.block_until_ready((mu, sigma))
    assert mu.shape == (batch, act_size) and sigma.shape == (batch, act_size)
    assert jnp.allclose(mu, mu_ref, atol=5e-2, rtol=5e-2)
    assert jnp.allclose(sigma, sigma_ref, atol=5e-2, rtol=5e-2)
    # Clamp is applied in f32 inside the kernel, so the bounds hold exactly;
    # the lower bound is float32(1e-6), slightly below the float64 literal.
    lo = float(jnp.float32(1e-6))
    assert float(sigma.min()) >= lo and float(sigma.max()) <= 1.0

    # f32 parity path (tight tolerance against the f32 reference).
    mu32, sigma32 = sac_actor_forward(x, params, compute_dtype=jnp.float32)
    jax.block_until_ready((mu32, sigma32))
    assert jnp.allclose(mu32, mu_ref, atol=1e-4, rtol=1e-4)
    assert jnp.allclose(sigma32, sigma_ref, atol=1e-4, rtol=1e-4)

    # Ragged batch exercises the batch padding / slicing path.
    mu5, sigma5 = sac_actor_forward(x[:5], params)
    jax.block_until_ready((mu5, sigma5))
    assert mu5.shape == (5, act_size) and sigma5.shape == (5, act_size)
    assert jnp.allclose(mu5, mu_ref[:5], atol=5e-2, rtol=5e-2)
    assert jnp.allclose(sigma5, sigma_ref[:5], atol=5e-2, rtol=5e-2)

    # TODO(synk): sample_normal (tanh-squashed Normal rsample + log_prob) is a
    # stochastic training-time utility on top of forward(); it stays in plain
    # JAX and is not part of this deterministic forward kernel.

    print("KERNEL_OK")
</pallas_src>

<mosaic_0001>
module attributes {stable_mosaic.version = 11 : i64} {
  func.func @_sac_actor_kernel(%arg0: i32, %arg1: memref<8x16xbf16, #tpu.memory_space<vmem>>, %arg2: memref<16x512xbf16, #tpu.memory_space<vmem>>, %arg3: memref<1x512xf32, #tpu.memory_space<vmem>>, %arg4: memref<256x256xbf16, #tpu.memory_space<vmem>>, %arg5: memref<1x256xf32, #tpu.memory_space<vmem>>, %arg6: memref<256x256xbf16, #tpu.memory_space<vmem>>, %arg7: memref<1x256xf32, #tpu.memory_space<vmem>>, %arg8: memref<256x128xbf16, #tpu.memory_space<vmem>>, %arg9: memref<1x128xf32, #tpu.memory_space<vmem>>, %arg10: memref<256x128xbf16, #tpu.memory_space<vmem>>, %arg11: memref<1x128xf32, #tpu.memory_space<vmem>>, %arg12: memref<8x256xf32, #tpu.memory_space<vmem>>) attributes {dimension_semantics = [#tpu.dimension_semantics<parallel>], iteration_bounds = array<i64: 1>, scalar_prefetch = 0 : i64, scratch_operands = 0 : i64, tpu.core_type = #tpu.core_type<tc>, window_params = [{transform_indices = @transform_0, window_bounds = array<i64: 8, 16>}, {pipeline_mode = #tpu.pipeline_mode<synchronous>, transform_indices = @transform_1, window_bounds = array<i64: 16, 512>}, {pipeline_mode = #tpu.pipeline_mode<synchronous>, transform_indices = @transform_2, window_bounds = array<i64: 1, 512>}, {pipeline_mode = #tpu.pipeline_mode<synchronous>, transform_indices = @transform_3, window_bounds = array<i64: 256, 256>}, {pipeline_mode = #tpu.pipeline_mode<synchronous>, transform_indices = @transform_4, window_bounds = array<i64: 1, 256>}, {pipeline_mode = #tpu.pipeline_mode<synchronous>, transform_indices = @transform_5, window_bounds = array<i64: 256, 256>}, {pipeline_mode = #tpu.pipeline_mode<synchronous>, transform_indices = @transform_6, window_bounds = array<i64: 1, 256>}, {pipeline_mode = #tpu.pipeline_mode<synchronous>, transform_indices = @transform_7, window_bounds = array<i64: 256, 128>}, {pipeline_mode = #tpu.pipeline_mode<synchronous>, transform_indices = @transform_8, window_bounds = array<i64: 1, 128>}, {pipeline_mode = #tpu.pipeline_mode<synchronous>, transform_indices = @transform_9, window_bounds = array<i64: 256, 128>}, {pipeline_mode = #tpu.pipeline_mode<synchronous>, transform_indices = @transform_10, window_bounds = array<i64: 1, 128>}, {transform_indices = @transform_11, window_bounds = array<i64: 8, 256>}]} {
    %c0 = arith.constant 0 : index
    %c0_0 = arith.constant 0 : index
    %0 = vector.load %arg1[%c0, %c0_0] : memref<8x16xbf16, #tpu.memory_space<vmem>>, vector<8x16xbf16>
    %c0_1 = arith.constant 0 : index
    %c0_2 = arith.constant 0 : index
    %1 = vector.load %arg2[%c0_1, %c0_2] : memref<16x512xbf16, #tpu.memory_space<vmem>>, vector<16x512xbf16>
    %cst = arith.constant dense<0.000000e+00> : vector<8x512xf32>
    %2 = tpu.matmul %0, %1, %cst {dimension_numbers = #tpu.dot_dimension_numbers<[1], [0], [0], [1], [0, 0, 1, 1], [], []>} : vector<8x16xbf16>, vector<16x512xbf16>, vector<8x512xf32> -> vector<8x512xf32>
    %c0_3 = arith.constant 0 : index
    %c0_4 = arith.constant 0 : index
    %3 = vector.load %arg3[%c0_3, %c0_4] : memref<1x512xf32, #tpu.memory_space<vmem>>, vector<1x512xf32>
    %4 = vector.broadcast %3 : vector<1x512xf32> to vector<8x512xf32>
    %5 = arith.addf %2, %4 : vector<8x512xf32>
    %cst_5 = arith.constant 0.000000e+00 : f32
    %6 = vector.broadcast %cst_5 : f32 to vector<8x512xf32>
    %7 = arith.maximumf %5, %6 : vector<8x512xf32>
    %8 = vector.extract_strided_slice %7 {offsets = [0, 0], sizes = [8, 256], strides = [1, 1]} : vector<8x512xf32> to vector<8x256xf32>
    %9 = arith.truncf %8 : vector<8x256xf32> to vector<8x256xbf16>
    %10 = vector.extract_strided_slice %7 {offsets = [0, 256], sizes = [8, 256], strides = [1, 1]} : vector<8x512xf32> to vector<8x256xf32>
    %11 = arith.truncf %10 : vector<8x256xf32> to vector<8x256xbf16>
    %c0_6 = arith.constant 0 : index
    %c0_7 = arith.constant 0 : index
    %12 = vector.load %arg4[%c0_6, %c0_7] : memref<256x256xbf16, #tpu.memory_space<vmem>>, vector<256x256xbf16>
    %cst_8 = arith.constant dense<0.000000e+00> : vector<8x256xf32>
    %13 = tpu.matmul %9, %12, %cst_8 {dimension_numbers = #tpu.dot_dimension_numbers<[1], [0], [0], [1], [0, 0, 1, 1], [], []>} : vector<8x256xbf16>, vector<256x256xbf16>, vector<8x256xf32> -> vector<8x256xf32>
    %c0_9 = arith.constant 0 : index
    %c0_10 = arith.constant 0 : index
    %14 = vector.load %arg5[%c0_9, %c0_10] : memref<1x256xf32, #tpu.memory_space<vmem>>, vector<1x256xf32>
    %15 = vector.broadcast %14 : vector<1x256xf32> to vector<8x256xf32>
    %16 = arith.addf %13, %15 : vector<8x256xf32>
    %cst_11 = arith.constant 0.000000e+00 : f32
    %17 = vector.broadcast %cst_11 : f32 to vector<8x256xf32>
    %18 = arith.maximumf %16, %17 : vector<8x256xf32>
    %19 = arith.truncf %18 : vector<8x256xf32> to vector<8x256xbf16>
    %c0_12 = arith.constant 0 : index
    %c0_13 = arith.constant 0 : index
    %20 = vector.load %arg6[%c0_12, %c0_13] : memref<256x256xbf16, #tpu.memory_space<vmem>>, vector<256x256xbf16>
    %cst_14 = arith.constant dense<0.000000e+00> : vector<8x256xf32>
    %21 = tpu.matmul %11, %20, %cst_14 {dimension_numbers = #tpu.dot_dimension_numbers<[1], [0], [0], [1], [0, 0, 1, 1], [], []>} : vector<8x256xbf16>, vector<256x256xbf16>, vector<8x256xf32> -> vector<8x256xf32>
    %c0_15 = arith.constant 0 : index
    %c0_16 = arith.constant 0 : index
    %22 = vector.load %arg7[%c0_15, %c0_16] : memref<1x256xf32, #tpu.memory_space<vmem>>, vector<1x256xf32>
    %23 = vector.broadcast %22 : vector<1x256xf32> to vector<8x256xf32>
    %24 = arith.addf %21, %23 : vector<8x256xf32>
    %cst_17 = arith.constant 0.000000e+00 : f32
    %25 = vector.broadcast %cst_17 : f32 to vector<8x256xf32>
    %26 = arith.maximumf %24, %25 : vector<8x256xf32>
    %27 = arith.truncf %26 : vector<8x256xf32> to vector<8x256xbf16>
    %c0_18 = arith.constant 0 : index
    %c0_19 = arith.constant 0 : index
    %28 = vector.load %arg8[%c0_18, %c0_19] : memref<256x128xbf16, #tpu.memory_space<vmem>>, vector<256x128xbf16>
    %cst_20 = arith.constant dense<0.000000e+00> : vector<8x128xf32>
    %29 = tpu.matmul %19, %28, %cst_20 {dimension_numbers = #tpu.dot_dimension_numbers<[1], [0], [0], [1], [0, 0, 1, 1], [], []>} : vector<8x256xbf16>, vector<256x128xbf16>, vector<8x128xf32> -> vector<8x128xf32>
    %c0_21 = arith.constant 0 : index
    %c0_22 = arith.constant 0 : index
    %30 = vector.load %arg9[%c0_21, %c0_22] : memref<1x128xf32, #tpu.memory_space<vmem>>, vector<1x128xf32>
    %31 = vector.broadcast %30 : vector<1x128xf32> to vector<8x128xf32>
    %32 = arith.addf %29, %31 : vector<8x128xf32>
    %c0_23 = arith.constant 0 : index
    %c0_24 = arith.constant 0 : index
    %33 = vector.load %arg10[%c0_23, %c0_24] : memref<256x128xbf16, #tpu.memory_space<vmem>>, vector<256x128xbf16>
    %cst_25 = arith.constant dense<0.000000e+00> : vector<8x128xf32>
    %34 = tpu.matmul %27, %33, %cst_25 {dimension_numbers = #tpu.dot_dimension_numbers<[1], [0], [0], [1], [0, 0, 1, 1], [], []>} : vector<8x256xbf16>, vector<256x128xbf16>, vector<8x128xf32> -> vector<8x128xf32>
    %c0_26 = arith.constant 0 : index
    %c0_27 = arith.constant 0 : index
    %35 = vector.load %arg11[%c0_26, %c0_27] : memref<1x128xf32, #tpu.memory_space<vmem>>, vector<1x128xf32>
    %36 = vector.broadcast %35 : vector<1x128xf32> to vector<8x128xf32>
    %37 = arith.addf %34, %36 : vector<8x128xf32>
    %c0_28 = arith.constant 0 : index
    %c0_29 = arith.constant 0 : index
    %38 = vector.load %arg12[%c0_28, %c0_29] : memref<8x256xf32, #tpu.memory_space<vmem>>, vector<8x128xf32>
    tpu.vector_store %arg12[%c0_28, %c0_29], %32 {strides = array<i32>} : memref<8x256xf32, #tpu.memory_space<vmem>>, vector<8x128xf32>,
    %cst_30 = arith.constant 9.99999997E-7 : f32
    %cst_31 = arith.constant 1.000000e+00 : f32
    %39 = vector.broadcast %cst_30 : f32 to vector<8x128xf32>
    %40 = arith.maximumf %39, %37 : vector<8x128xf32>
    %41 = vector.broadcast %cst_31 : f32 to vector<8x128xf32>
    %42 = arith.minimumf %41, %40 : vector<8x128xf32>
    %c0_32 = arith.constant 0 : index
    %c128 = arith.constant 128 : index
    %43 = vector.load %arg12[%c0_32, %c128] : memref<8x256xf32, #tpu.memory_space<vmem>>, vector<8x128xf32>
    tpu.vector_store %arg12[%c0_32, %c128], %42 {strides = array<i32>} : memref<8x256xf32, #tpu.memory_space<vmem>>, vector<8x128xf32>,
    return
  }
  func.func @transform_0(%arg0: i32) -> (i32, i32) {
    %c0_i32 = arith.constant 0 : i32
    %c0_i32_0 = arith.constant 0 : i32
    return %arg0, %c0_i32 : i32, i32
  }
  func.func @transform_1(%arg0: i32) -> (i32, i32) {
    %c0_i32 = arith.constant 0 : i32
    %c0_i32_0 = arith.constant 0 : i32
    %c0_i32_1 = arith.constant 0 : i32
    return %c0_i32, %c0_i32_0 : i32, i32
  }
  func.func @transform_2(%arg0: i32) -> (i32, i32) {
    %c0_i32 = arith.constant 0 : i32
    %c0_i32_0 = arith.constant 0 : i32
    %c0_i32_1 = arith.constant 0 : i32
    return %c0_i32, %c0_i32_0 : i32, i32
  }
  func.func @transform_3(%arg0: i32) -> (i32, i32) {
    %c0_i32 = arith.constant 0 : i32
    %c0_i32_0 = arith.constant 0 : i32
    %c0_i32_1 = arith.constant 0 : i32
    return %c0_i32, %c0_i32_0 : i32, i32
  }
  func.func @transform_4(%arg0: i32) -> (i32, i32) {
    %c0_i32 = arith.constant 0 : i32
    %c0_i32_0 = arith.constant 0 : i32
    %c0_i32_1 = arith.constant 0 : i32
    return %c0_i32, %c0_i32_0 : i32, i32
  }
  func.func @transform_5(%arg0: i32) -> (i32, i32) {
    %c0_i32 = arith.constant 0 : i32
    %c0_i32_0 = arith.constant 0 : i32
    %c0_i32_1 = arith.constant 0 : i32
    return %c0_i32, %c0_i32_0 : i32, i32
  }
  func.func @transform_6(%arg0: i32) -> (i32, i32) {
    %c0_i32 = arith.constant 0 : i32
    %c0_i32_0 = arith.constant 0 : i32
    %c0_i32_1 = arith.constant 0 : i32
    return %c0_i32, %c0_i32_0 : i32, i32
  }
  func.func @transform_7(%arg0: i32) -> (i32, i32) {
    %c0_i32 = arith.constant 0 : i32
    %c0_i32_0 = arith.constant 0 : i32
    %c0_i32_1 = arith.constant 0 : i32
    return %c0_i32, %c0_i32_0 : i32, i32
  }
  func.func @transform_8(%arg0: i32) -> (i32, i32) {
    %c0_i32 = arith.constant 0 : i32
    %c0_i32_0 = arith.constant 0 : i32
    %c0_i32_1 = arith.constant 0 : i32
    return %c0_i32, %c0_i32_0 : i32, i32
  }
  func.func @transform_9(%arg0: i32) -> (i32, i32) {
    %c0_i32 = arith.constant 0 : i32
    %c0_i32_0 = arith.constant 0 : i32
    %c0_i32_1 = arith.constant 0 : i32
    return %c0_i32, %c0_i32_0 : i32, i32
  }
  func.func @transform_10(%arg0: i32) -> (i32, i32) {
    %c0_i32 = arith.constant 0 : i32
    %c0_i32_0 = arith.constant 0 : i32
    %c0_i32_1 = arith.constant 0 : i32
    return %c0_i32, %c0_i32_0 : i32, i32
  }
  func.func @transform_11(%arg0: i32) -> (i32, i32) {
    %c0_i32 = arith.constant 0 : i32
    %c0_i32_0 = arith.constant 0 : i32
    return %arg0, %c0_i32 : i32, i32
  }
}

</mosaic_0001>

<llo_original>
// kernel: _sac_actor_forward_impl.1
$region0: #{_sac_actor_forward_impl.1}
  #allocation0 [shape = 'u32[]', space=smem, size = 0x4, offset = 0x4, fixed_abs, tag = 'smem constant byte address 0x4 - core index']
  #allocation1 [shape = 'u32[144,128]{1,0:T(1,128)}', space=vmem, size = 0x12000, scoped, tag = 'internal scratch']
  %s0 = inlined_call_operand.vmem [shape: bf16[8,16], index: 0, kind: input, shape index: {}]
  %s1 = inlined_call_operand.vmem [shape: bf16[16,512], index: 1, kind: input, shape index: {}]
  %s2 = inlined_call_operand.vmem [shape: f32[1,512], index: 2, kind: input, shape index: {}]
  %s3 = inlined_call_operand.vmem [shape: bf16[256,256], index: 3, kind: input, shape index: {}]
  %s4 = inlined_call_operand.vmem [shape: f32[1,256], index: 4, kind: input, shape index: {}]
  %s5 = inlined_call_operand.vmem [shape: bf16[256,256], index: 5, kind: input, shape index: {}]
  %s6 = inlined_call_operand.vmem [shape: f32[1,256], index: 6, kind: input, shape index: {}]
  %s7 = inlined_call_operand.vmem [shape: bf16[256,128], index: 7, kind: input, shape index: {}]
  %s8 = inlined_call_operand.vmem [shape: f32[1,128], index: 8, kind: input, shape index: {}]
  %s9 = inlined_call_operand.vmem [shape: bf16[256,128], index: 9, kind: input, shape index: {}]
  %s10 = inlined_call_operand.vmem [shape: f32[1,128], index: 10, kind: input, shape index: {}]
  %s11 = inlined_call_operand.vmem [shape: f32[8,256], index: 11, kind: output, shape index: {}]
  %s12 = sld [smem:[#allocation0]]
  $region54: #{_sac_actor_forward_impl.1} parent=0
    _
  %s14 = ssub.s32 1, %s12
  %s15 = scalar_select 0, %s14, %s12
  // Predicated region
  $region2: #{_sac_actor_forward_impl.1} parent=0 // pred_check
    _
  $region3: #{_sac_actor_forward_impl.1} parent=0 // pred_check_branch
    %17 = sbr.rel (0) target = $region5
  $region4: #{_sac_actor_forward_impl.1} parent=0 // pred_region
    _
  $region5: #{_sac_actor_forward_impl.1} parent=0 // pred_fallthru
    _
  // Predicated region
  $region6: #{_sac_actor_forward_impl.1} parent=0 // pred_check
    _
  $region7: #{_sac_actor_forward_impl.1} parent=0 // pred_check_branch
    %19 = sbr.rel (0) target = $region9
  $region8: #{_sac_actor_forward_impl.1} parent=0 // pred_region
    _
  $region9: #{_sac_actor_forward_impl.1} parent=0 // pred_fallthru
    _
  // Predicated region
  $region10: #{_sac_actor_forward_impl.1} parent=0 // pred_check
    _
  $region11: #{_sac_actor_forward_impl.1} parent=0 // pred_check_branch
    %21 = sbr.rel (0) target = $region13
  $region12: #{_sac_actor_forward_impl.1} parent=0 // pred_region
    _
  $region13: #{_sac_actor_forward_impl.1} parent=0 // pred_fallthru
    _
  // Predicated region
  $region14: #{_sac_actor_forward_impl.1} parent=0 // pred_check
    _
  $region15: #{_sac_actor_forward_impl.1} parent=0 // pred_check_branch
    %23 = sbr.rel (0) target = $region17
  $region16: #{_sac_actor_forward_impl.1} parent=0 // pred_region
    _
  $region17: #{_sac_actor_forward_impl.1} parent=0 // pred_fallthru
    _
  // Predicated region
  $region18: #{_sac_actor_forward_impl.1} parent=0 // pred_check
    _
  $region19: #{_sac_actor_forward_impl.1} parent=0 // pred_check_branch
    %25 = sbr.rel (0) target = $region21
  $region20: #{_sac_actor_forward_impl.1} parent=0 // pred_region
    _
  $region21: #{_sac_actor_forward_impl.1} parent=0 // pred_fallthru
    _
  // Predicated region
  $region22: #{_sac_actor_forward_impl.1} parent=0 // pred_check
    _
  $region23: #{_sac_actor_forward_impl.1} parent=0 // pred_check_branch
    %27 = sbr.rel (0) target = $region25
  $region24: #{_sac_actor_forward_impl.1} parent=0 // pred_region
    _
  $region25: #{_sac_actor_forward_impl.1} parent=0 // pred_fallthru
    _
  // Predicated region
  $region26: #{_sac_actor_forward_impl.1} parent=0 // pred_check
    _
  $region27: #{_sac_actor_forward_impl.1} parent=0 // pred_check_branch
    %29 = sbr.rel (0) target = $region29
  $region28: #{_sac_actor_forward_impl.1} parent=0 // pred_region
    _
  $region29: #{_sac_actor_forward_impl.1} parent=0 // pred_fallthru
    _
  // Predicated region
  $region30: #{_sac_actor_forward_impl.1} parent=0 // pred_check
    _
  $region31: #{_sac_actor_forward_impl.1} parent=0 // pred_check_branch
    %31 = sbr.rel (0) target = $region33
  $region32: #{_sac_actor_forward_impl.1} parent=0 // pred_region
    _
  $region33: #{_sac_actor_forward_impl.1} parent=0 // pred_fallthru
    _
  // Predicated region
  $region34: #{_sac_actor_forward_impl.1} parent=0 // pred_check
    _
  $region35: #{_sac_actor_forward_impl.1} parent=0 // pred_check_branch
    %33 = sbr.rel (0) target = $region37
  $region36: #{_sac_actor_forward_impl.1} parent=0 // pred_region
    _
  $region37: #{_sac_actor_forward_impl.1} parent=0 // pred_fallthru
    _
  // Predicated region
  $region38: #{_sac_actor_forward_impl.1} parent=0 // pred_check
    _
  $region39: #{_sac_actor_forward_impl.1} parent=0 // pred_check_branch
    %35 = sbr.rel (0) target = $region41
  $region40: #{_sac_actor_forward_impl.1} parent=0 // pred_region
    _
  $region41: #{_sac_actor_forward_impl.1} parent=0 // pred_fallthru
    _
  // Predicated region
  $region42: #{_sac_actor_forward_impl.1} parent=0 // pred_check
    _
  $region43: #{_sac_actor_forward_impl.1} parent=0 // pred_check_branch
    %37 = sbr.rel (0) target = $region45
  $region44: #{_sac_actor_forward_impl.1} parent=0 // pred_region
    _
  $region45: #{_sac_actor_forward_impl.1} parent=0 // pred_fallthru
    _
  %v39 = vld [vmem:[%s0] sm:$0xf]
  %v40 = vld [vmem:[%s1] sm:$0xff]
  %v41 = vld [vmem:[%s1 + $0x8] sm:$0xff]
  %v42 = vld [vmem:[%s1 + $0x10] sm:$0xff]
  %v43 = vld [vmem:[%s1 + $0x18] sm:$0xff]
  %v44 = vld [vmem:[%s2] sm:$0xf]
  %v46 = vlaneseq
  %v47 = vshrl.u32 %v46, 7
  %v48 = vsub.s32 0, %v47
  %v49 = vrot.slane %v44, %v48
  %v50 = vlaneseq
  %v51 = vshrl.u32 %v50, 7
  %v52 = vsub.s32 1, %v51
  %v53 = vrot.slane %v44, %v52
  %v54 = vlaneseq
  %v55 = vshrl.u32 %v54, 7
  %v56 = vsub.s32 2, %v55
  %v57 = vrot.slane %v44, %v56
  %v58 = vlaneseq
  %v59 = vshrl.u32 %v58, 7
  %v60 = vsub.s32 3, %v59
  %v61 = vrot.slane %v44, %v60
  %v70 = vunpack.c.l.b16 %v40
  %v71 = vunpack.c.h.b16 %v40
  %v72 = vunpack.c.l.b16 %v41
  %v73 = vunpack.c.h.b16 %v41
  %v74 = vunpack.c.l.b16 %v42
  %v75 = vunpack.c.h.b16 %v42
  %v76 = vunpack.c.l.b16 %v43
  %v77 = vunpack.c.h.b16 %v43
  %v78 = vpack.c.b16 %v74, %v70
  %v79 = vpack.c.b16 %v75, %v71
  %v80 = vpack.c.b16 %v76, %v72
  %v81 = vpack.c.b16 %v77, %v73
  %vm86 = vcmask 130048
  %v88 = vsel %vm86, %v39, 0
  %90 = vmatprep.subr.bf16.mxu0 %v79
  %91 = vmatpush1.bf16.msra.mxu0 %v78
  %92 = vmatprep.subr.bf16.mxu0 0
  %93 = vmatpush1.bf16.msra.mxu0 0
  %94 = vmatprep.subr.bf16.mxu0 0
  %95 = vmatpush1.bf16.msra.mxu0 0
  %96 = vmatprep.subr.bf16.mxu0 0
  %97 = vmatpush1.bf16.msra.mxu0 0
  %98 = vmatprep.subr.bf16.mxu0 0
  %99 = vmatpush1.bf16.msra.mxu0 0
  %100 = vmatprep.subr.bf16.mxu0 0
  %101 = vmatpush1.bf16.msra.mxu0 0
  %102 = vmatprep.subr.bf16.mxu0 0
  %103 = vmatpush1.bf16.msra.mxu0 0
  %104 = vmatprep.subr.bf16.mxu0 0
  %105 = vmatpush1.bf16.msra.mxu0 0
  %106 = vmatprep.subr.bf16.mxu0 0
  %107 = vmatpush1.bf16.msra.mxu0 0
  %108 = vmatprep.subr.bf16.mxu0 0
  %109 = vmatpush1.bf16.msra.mxu0 0
  %110 = vmatprep.subr.bf16.mxu0 0
  %111 = vmatpush1.bf16.msra.mxu0 0
  %112 = vmatprep.subr.bf16.mxu0 0
  %113 = vmatpush1.bf16.msra.mxu0 0
  %114 = vmatprep.subr.bf16.mxu0 0
  %115 = vmatpush1.bf16.msra.mxu0 0
  %116 = vmatprep.subr.bf16.mxu0 0
  %117 = vmatpush1.bf16.msra.mxu0 0
  %118 = vmatprep.subr.bf16.mxu0 0
  %119 = vmatpush1.bf16.msra.mxu0 0
  %120 = vmatprep.subr.bf16.mxu0 0
  %121 = vmatpush1.bf16.msra.mxu0 0
  %122 = vmatprep.mubr.bf16.mxu0 0
  %123 = vmatmul.mubr.bf16.gmra.mrb[0].mxu0 %v88
  %v124 = vpop.f32.mrb[0].mxu0
  %v125 = vadd.f32 %v49, %v124
  %v126 = vpop.f32.mrb[0].mxu0
  %v127 = vadd.f32 %v53, %v126
  %v128 = vpop.f32.mrb[0].mxu0
  %v129 = vpop.f32.mrb[0].mxu0
  %130 = vdwg.mxu0
  %131 = vmatprep.subr.bf16.mxu0 %v81
  %132 = vmatpush1.bf16.msra.mxu0 %v80
  %133 = vmatprep.subr.bf16.mxu0 0
  %134 = vmatpush1.bf16.msra.mxu0 0
  %135 = vmatprep.subr.bf16.mxu0 0
  %136 = vmatpush1.bf16.msra.mxu0 0
  %137 = vmatprep.subr.bf16.mxu0 0
  %138 = vmatpush1.bf16.msra.mxu0 0
  %139 = vmatprep.subr.bf16.mxu0 0
  %140 = vmatpush1.bf16.msra.mxu0 0
  %141 = vmatprep.subr.bf16.mxu0 0
  %142 = vmatpush1.bf16.msra.mxu0 0
  %143 = vmatprep.subr.bf16.mxu0 0
  %144 = vmatpush1.bf16.msra.mxu0 0
  %145 = vmatprep.subr.bf16.mxu0 0
  %146 = vmatpush1.bf16.msra.mxu0 0
  %147 = vmatprep.subr.bf16.mxu0 0
  %148 = vmatpush1.bf16.msra.mxu0 0
  %149 = vmatprep.subr.bf16.mxu0 0
  %150 = vmatpush1.bf16.msra.mxu0 0
  %151 = vmatprep.subr.bf16.mxu0 0
  %152 = vmatpush1.bf16.msra.mxu0 0
  %153 = vmatprep.subr.bf16.mxu0 0
  %154 = vmatpush1.bf16.msra.mxu0 0
  %155 = vmatprep.subr.bf16.mxu0 0
  %156 = vmatpush1.bf16.msra.mxu0 0
  %157 = vmatprep.subr.bf16.mxu0 0
  %158 = vmatpush1.bf16.msra.mxu0 0
  %159 = vmatprep.subr.bf16.mxu0 0
  %160 = vmatpush1.bf16.msra.mxu0 0
  %161 = vmatprep.subr.bf16.mxu0 0
  %162 = vmatpush1.bf16.msra.mxu0 0
  %163 = vmatprep.mubr.bf16.mxu0 0
  %164 = vmatmul.mubr.bf16.gmra.mrb[0].mxu0 %v88
  %v165 = vpop.f32.mrb[0].mxu0
  %v166 = vadd.f32 %v57, %v165
  %v167 = vpop.f32.mrb[0].mxu0
  %v168 = vadd.f32 %v61, %v167
  %v169 = vpop.f32.mrb[0].mxu0
  %v170 = vpop.f32.mrb[0].mxu0
  %171 = vdwg.mxu0
  %v172 = vmax.f32 %v125, 0.0
  %v173 = vmax.f32 %v127, 0.0
  %v174 = vmax.f32 %v166, 0.0
  %v175 = vmax.f32 %v168, 0.0
  %v176 = vpack.c.bf16 %v172, %v172
  %v177 = vpack.c.bf16 %v173, %v173
  %v178 = vpack.c.bf16 %v174, %v174
  %v179 = vpack.c.bf16 %v175, %v175
  %v180 = vld [vmem:[%s3] sm:$0xff]
  %v181 = vld [vmem:[%s3 + $0x8] sm:$0xff]
  %v182 = vld [vmem:[%s3 + $0x10] sm:$0xff]
  %v183 = vld [vmem:[%s3 + $0x18] sm:$0xff]
  %v184 = vld [vmem:[%s3 + $0x20] sm:$0xff]
  %v185 = vld [vmem:[%s3 + $0x28] sm:$0xff]
  %v186 = vld [vmem:[%s3 + $0x30] sm:$0xff]
  %v187 = vld [vmem:[%s3 + $0x38] sm:$0xff]
  %v188 = vld [vmem:[%s3 + $0x40] sm:$0xff]
  %v189 = vld [vmem:[%s3 + $0x48] sm:$0xff]
  %v190 = vld [vmem:[%s3 + $0x50] sm:$0xff]
  %v191 = vld [vmem:[%s3 + $0x58] sm:$0xff]
  %v192 = vld [vmem:[%s3 + $0x60] sm:$0xff]
  %v193 = vld [vmem:[%s3 + $0x68] sm:$0xff]
  %v194 = vld [vmem:[%s3 + $0x70] sm:$0xff]
  %v195 = vld [vmem:[%s3 + $0x78] sm:$0xff]
  %v196 = vld [vmem:[%s3 + $0x80] sm:$0xff]
  %v197 = vld [vmem:[%s3 + $0x88] sm:$0xff]
  %v198 = vld [vmem:[%s3 + $0x90] sm:$0xff]
  %v199 = vld [vmem:[%s3 + $0x98] sm:$0xff]
  %v200 = vld [vmem:[%s3 + $0xa0] sm:$0xff]
  %v201 = vld [vmem:[%s3 + $0xa8] sm:$0xff]
  %v202 = vld [vmem:[%s3 + $0xb0] sm:$0xff]
  %v203 = vld [vmem:[%s3 + $0xb8] sm:$0xff]
  %v204 = vld [vmem:[%s3 + $0xc0] sm:$0xff]
  %v205 = vld [vmem:[%s3 + $0xc8] sm:$0xff]
  %v206 = vld [vmem:[%s3 + $0xd0] sm:$0xff]
  %v207 = vld [vmem:[%s3 + $0xd8] sm:$0xff]
  %v208 = vld [vmem:[%s3 + $0xe0] sm:$0xff]
  %v209 = vld [vmem:[%s3 + $0xe8] sm:$0xff]
  %v210 = vld [vmem:[%s3 + $0xf0] sm:$0xff]
  %v211 = vld [vmem:[%s3 + $0xf8] sm:$0xff]
  %v212 = vld [vmem:[%s4] sm:$0x3]
  %v214 = vlaneseq
  %v215 = vshrl.u32 %v214, 7
  %v216 = vsub.s32 0, %v215
  %v217 = vrot.slane %v212, %v216
  %v218 = vlaneseq
  %v219 = vshrl.u32 %v218, 7
  %v220 = vsub.s32 1, %v219
  %v221 = vrot.slane %v212, %v220
  %v256 = vunpack.c.l.b16 %v180
  %v257 = vunpack.c.h.b16 %v180
  %v258 = vunpack.c.l.b16 %v181
  %v259 = vunpack.c.h.b16 %v181
  %v260 = vunpack.c.l.b16 %v182
  %v261 = vunpack.c.h.b16 %v182
  %v262 = vunpack.c.l.b16 %v183
  %v263 = vunpack.c.h.b16 %v183
  %v264 = vunpack.c.l.b16 %v184
  %v265 = vunpack.c.h.b16 %v184
  %v266 = vunpack.c.l.b16 %v185
  %v267 = vunpack.c.h.b16 %v185
  %v268 = vunpack.c.l.b16 %v186
  %v269 = vunpack.c.h.b16 %v186
  %v270 = vunpack.c.l.b16 %v187
  %v271 = vunpack.c.h.b16 %v187
  %v272 = vunpack.c.l.b16 %v188
  %v273 = vunpack.c.h.b16 %v188
  %v274 = vunpack.c.l.b16 %v189
  %v275 = vunpack.c.h.b16 %v189
  %v276 = vunpack.c.l.b16 %v190
  %v277 = vunpack.c.h.b16 %v190
  %v278 = vunpack.c.l.b16 %v191
  %v279 = vunpack.c.h.b16 %v191
  %v280 = vunpack.c.l.b16 %v192
  %v281 = vunpack.c.h.b16 %v192
  %v282 = vunpack.c.l.b16 %v193
  %v283 = vunpack.c.h.b16 %v193
  %v284 = vunpack.c.l.b16 %v194
  %v285 = vunpack.c.h.b16 %v194
  %v286 = vunpack.c.l.b16 %v195
  %v287 = vunpack.c.h.b16 %v195
  %v288 = vunpack.c.l.b16 %v196
  %v289 = vunpack.c.h.b16 %v196
  %v290 = vunpack.c.l.b16 %v197
  %v291 = vunpack.c.h.b16 %v197
  %v292 = vunpack.c.l.b16 %v198
  %v293 = vunpack.c.h.b16 %v198
  %v294 = vunpack.c.l.b16 %v199
  %v295 = vunpack.c.h.b16 %v199
  %v296 = vunpack.c.l.b16 %v200
  %v297 = vunpack.c.h.b16 %v200
  %v298 = vunpack.c.l.b16 %v201
  %v299 = vunpack.c.h.b16 %v201
  %v300 = vunpack.c.l.b16 %v202
  %v301 = vunpack.c.h.b16 %v202
  %v302 = vunpack.c.l.b16 %v203
  %v303 = vunpack.c.h.b16 %v203
  %v304 = vunpack.c.l.b16 %v204
  %v305 = vunpack.c.h.b16 %v204
  %v306 = vunpack.c.l.b16 %v205
  %v307 = vunpack.c.h.b16 %v205
  %v308 = vunpack.c.l.b16 %v206
  %v309 = vunpack.c.h.b16 %v206
  %v310 = vunpack.c.l.b16 %v207
  %v311 = vunpack.c.h.b16 %v207
  %v312 = vunpack.c.l.b16 %v208
  %v313 = vunpack.c.h.b16 %v208
  %v314 = vunpack.c.l.b16 %v209
  %v315 = vunpack.c.h.b16 %v209
  %v316 = vunpack.c.l.b16 %v210
  %v317 = vunpack.c.h.b16 %v210
  %v318 = vunpack.c.l.b16 %v211
  %v319 = vunpack.c.h.b16 %v211
  %v320 = vpack.c.b16 %v258, %v256
  %v321 = vpack.c.b16 %v259, %v257
  %v322 = vpack.c.b16 %v262, %v260
  %v323 = vpack.c.b16 %v263, %v261
  %v324 = vpack.c.b16 %v266, %v264
  %v325 = vpack.c.b16 %v267, %v265
  %v326 = vpack.c.b16 %v270, %v268
  %v327 = vpack.c.b16 %v271, %v269
  %v328 = vpack.c.b16 %v274, %v272
  %v329 = vpack.c.b16 %v275, %v273
  %v330 = vpack.c.b16 %v278, %v276
  %v331 = vpack.c.b16 %v279, %v277
  %v332 = vpack.c.b16 %v282, %v280
  %v333 = vpack.c.b16 %v283, %v281
  %v334 = vpack.c.b16 %v286, %v284
  %v335 = vpack.c.b16 %v287, %v285
  %v336 = vpack.c.b16 %v290, %v288
  %v337 = vpack.c.b16 %v291, %v289
  %v338 = vpack.c.b16 %v294, %v292
  %v339 = vpack.c.b16 %v295, %v293
  %v340 = vpack.c.b16 %v298, %v296
  %v341 = vpack.c.b16 %v299, %v297
  %v342 = vpack.c.b16 %v302, %v300
  %v343 = vpack.c.b16 %v303, %v301
  %v344 = vpack.c.b16 %v306, %v304
  %v345 = vpack.c.b16 %v307, %v305
  %v346 = vpack.c.b16 %v310, %v308
  %v347 = vpack.c.b16 %v311, %v309
  %v348 = vpack.c.b16 %v314, %v312
  %v349 = vpack.c.b16 %v315, %v313
  %v350 = vpack.c.b16 %v318, %v316
  %v351 = vpack.c.b16 %v319, %v317
  %384 = vmatprep.subr.bf16.mxu0 %v321
  %385 = vmatpush1.bf16.msra.mxu0 %v320
  %386 = vmatprep.subr.bf16.mxu0 %v323
  %387 = vmatpush1.bf16.msra.mxu0 %v322
  %388 = vmatprep.subr.bf16.mxu0 %v325
  %389 = vmatpush1.bf16.msra.mxu0 %v324
  %390 = vmatprep.subr.bf16.mxu0 %v327
  %391 = vmatpush1.bf16.msra.mxu0 %v326
  %392 = vmatprep.subr.bf16.mxu0 %v329
  %393 = vmatpush1.bf16.msra.mxu0 %v328
  %394 = vmatprep.subr.bf16.mxu0 %v331
  %395 = vmatpush1.bf16.msra.mxu0 %v330
  %396 = vmatprep.subr.bf16.mxu0 %v333
  %397 = vmatpush1.bf16.msra.mxu0 %v332
  %398 = vmatprep.subr.bf16.mxu0 %v335
  %399 = vmatpush1.bf16.msra.mxu0 %v334
  %400 = vmatprep.subr.bf16.mxu0 %v337
  %401 = vmatpush1.bf16.msra.mxu0 %v336
  %402 = vmatprep.subr.bf16.mxu0 %v339
  %403 = vmatpush1.bf16.msra.mxu0 %v338
  %404 = vmatprep.subr.bf16.mxu0 %v341
  %405 = vmatpush1.bf16.msra.mxu0 %v340
  %406 = vmatprep.subr.bf16.mxu0 %v343
  %407 = vmatpush1.bf16.msra.mxu0 %v342
  %408 = vmatprep.subr.bf16.mxu0 %v345
  %409 = vmatpush1.bf16.msra.mxu0 %v344
  %410 = vmatprep.subr.bf16.mxu0 %v347
  %411 = vmatpush1.bf16.msra.mxu0 %v346
  %412 = vmatprep.subr.bf16.mxu0 %v349
  %413 = vmatpush1.bf16.msra.mxu0 %v348
  %414 = vmatprep.subr.bf16.mxu0 %v351
  %415 = vmatpush1.bf16.msra.mxu0 %v350
  %416 = vmatprep.mubr.bf16.mxu0 %v177
  %417 = vmatmul.mubr.bf16.gmra.mrb[0].mxu0 %v176
  %v418 = vpop.f32.mrb[0].mxu0
  %v419 = vadd.f32 %v217, %v418
  %v420 = vpop.f32.mrb[0].mxu0
  %v421 = vadd.f32 %v221, %v420
  %v422 = vpop.f32.mrb[0].mxu0
  %v423 = vpop.f32.mrb[0].mxu0
  %424 = vdwg.mxu0
  %v425 = vmax.f32 %v419, 0.0
  %v426 = vmax.f32 %v421, 0.0
  %v427 = vpack.c.bf16 %v425, %v425
  %v428 = vpack.c.bf16 %v426, %v426
  %v429 = vld [vmem:[%s5] sm:$0xff]
  %v430 = vld [vmem:[%s5 + $0x8] sm:$0xff]
  %v431 = vld [vmem:[%s5 + $0x10] sm:$0xff]
  %v432 = vld [vmem:[%s5 + $0x18] sm:$0xff]
  %v433 = vld [vmem:[%s5 + $0x20] sm:$0xff]
  %v434 = vld [vmem:[%s5 + $0x28] sm:$0xff]
  %v435 = vld [vmem:[%s5 + $0x30] sm:$0xff]
  %v436 = vld [vmem:[%s5 + $0x38] sm:$0xff]
  %v437 = vld [vmem:[%s5 + $0x40] sm:$0xff]
  %v438 = vld [vmem:[%s5 + $0x48] sm:$0xff]
  %v439 = vld [vmem:[%s5 + $0x50] sm:$0xff]
  %v440 = vld [vmem:[%s5 + $0x58] sm:$0xff]
  %v441 = vld [vmem:[%s5 + $0x60] sm:$0xff]
  %v442 = vld [vmem:[%s5 + $0x68] sm:$0xff]
  %v443 = vld [vmem:[%s5 + $0x70] sm:$0xff]
  %v444 = vld [vmem:[%s5 + $0x78] sm:$0xff]
  %v445 = vld [vmem:[%s5 + $0x80] sm:$0xff]
  %v446 = vld [vmem:[%s5 + $0x88] sm:$0xff]
  %v447 = vld [vmem:[%s5 + $0x90] sm:$0xff]
  %v448 = vld [vmem:[%s5 + $0x98] sm:$0xff]
  %v449 = vld [vmem:[%s5 + $0xa0] sm:$0xff]
  %v450 = vld [vmem:[%s5 + $0xa8] sm:$0xff]
  %v451 = vld [vmem:[%s5 + $0xb0] sm:$0xff]
  %v452 = vld [vmem:[%s5 + $0xb8] sm:$0xff]
  %v453 = vld [vmem:[%s5 + $0xc0] sm:$0xff]
  %v454 = vld [vmem:[%s5 + $0xc8] sm:$0xff]
  %v455 = vld [vmem:[%s5 + $0xd0] sm:$0xff]
  %v456 = vld [vmem:[%s5 + $0xd8] sm:$0xff]
  %v457 = vld [vmem:[%s5 + $0xe0] sm:$0xff]
  %v458 = vld [vmem:[%s5 + $0xe8] sm:$0xff]
  %v459 = vld [vmem:[%s5 + $0xf0] sm:$0xff]
  %v460 = vld [vmem:[%s5 + $0xf8] sm:$0xff]
  %v461 = vld [vmem:[%s6] sm:$0x3]
  %v463 = vlaneseq
  %v464 = vshrl.u32 %v463, 7
  %v465 = vsub.s32 0, %v464
  %v466 = vrot.slane %v461, %v465
  %v467 = vlaneseq
  %v468 = vshrl.u32 %v467, 7
  %v469 = vsub.s32 1, %v468
  %v470 = vrot.slane %v461, %v469
  %v505 = vunpack.c.l.b16 %v429
  %v506 = vunpack.c.h.b16 %v429
  %v507 = vunpack.c.l.b16 %v430
  %v508 = vunpack.c.h.b16 %v430
  %v509 = vunpack.c.l.b16 %v431
  %v510 = vunpack.c.h.b16 %v431
  %v511 = vunpack.c.l.b16 %v432
  %v512 = vunpack.c.h.b16 %v432
  %v513 = vunpack.c.l.b16 %v433
  %v514 = vunpack.c.h.b16 %v433
  %v515 = vunpack.c.l.b16 %v434
  %v516 = vunpack.c.h.b16 %v434
  %v517 = vunpack.c.l.b16 %v435
  %v518 = vunpack.c.h.b16 %v435
  %v519 = vunpack.c.l.b16 %v436
  %v520 = vunpack.c.h.b16 %v436
  %v521 = vunpack.c.l.b16 %v437
  %v522 = vunpack.c.h.b16 %v437
  %v523 = vunpack.c.l.b16 %v438
  %v524 = vunpack.c.h.b16 %v438
  %v525 = vunpack.c.l.b16 %v439
  %v526 = vunpack.c.h.b16 %v439
  %v527 = vunpack.c.l.b16 %v440
  %v528 = vunpack.c.h.b16 %v440
  %v529 = vunpack.c.l.b16 %v441
  %v530 = vunpack.c.h.b16 %v441
  %v531 = vunpack.c.l.b16 %v442
  %v532 = vunpack.c.h.b16 %v442
  %v533 = vunpack.c.l.b16 %v443
  %v534 = vunpack.c.h.b16 %v443
  %v535 = vunpack.c.l.b16 %v444
  %v536 = vunpack.c.h.b16 %v444
  %v537 = vunpack.c.l.b16 %v445
  %v538 = vunpack.c.h.b16 %v445
  %v539 = vunpack.c.l.b16 %v446
  %v540 = vunpack.c.h.b16 %v446
  %v541 = vunpack.c.l.b16 %v447
  %v542 = vunpack.c.h.b16 %v447
  %v543 = vunpack.c.l.b16 %v448
  %v544 = vunpack.c.h.b16 %v448
  %v545 = vunpack.c.l.b16 %v449
  %v546 = vunpack.c.h.b16 %v449
  %v547 = vunpack.c.l.b16 %v450
  %v548 = vunpack.c.h.b16 %v450
  %v549 = vunpack.c.l.b16 %v451
  %v550 = vunpack.c.h.b16 %v451
  %v551 = vunpack.c.l.b16 %v452
  %v552 = vunpack.c.h.b16 %v452
  %v553 = vunpack.c.l.b16 %v453
  %v554 = vunpack.c.h.b16 %v453
  %v555 = vunpack.c.l.b16 %v454
  %v556 = vunpack.c.h.b16 %v454
  %v557 = vunpack.c.l.b16 %v455
  %v558 = vunpack.c.h.b16 %v455
  %v559 = vunpack.c.l.b16 %v456
  %v560 = vunpack.c.h.b16 %v456
  %v561 = vunpack.c.l.b16 %v457
  %v562 = vunpack.c.h.b16 %v457
  %v563 = vunpack.c.l.b16 %v458
  %v564 = vunpack.c.h.b16 %v458
  %v565 = vunpack.c.l.b16 %v459
  %v566 = vunpack.c.h.b16 %v459
  %v567 = vunpack.c.l.b16 %v460
  %v568 = vunpack.c.h.b16 %v460
  %v569 = vpack.c.b16 %v507, %v505
  %v570 = vpack.c.b16 %v508, %v506
  %v571 = vpack.c.b16 %v511, %v509
  %v572 = vpack.c.b16 %v512, %v510
  %v573 = vpack.c.b16 %v515, %v513
  %v574 = vpack.c.b16 %v516, %v514
  %v575 = vpack.c.b16 %v519, %v517
  %v576 = vpack.c.b16 %v520, %v518
  %v577 = vpack.c.b16 %v523, %v521
  %v578 = vpack.c.b16 %v524, %v522
  %v579 = vpack.c.b16 %v527, %v525
  %v580 = vpack.c.b16 %v528, %v526
  %v581 = vpack.c.b16 %v531, %v529
  %v582 = vpack.c.b16 %v532, %v530
  %v583 = vpack.c.b16 %v535, %v533
  %v584 = vpack.c.b16 %v536, %v534
  %v585 = vpack.c.b16 %v539, %v537
  %v586 = vpack.c.b16 %v540, %v538
  %v587 = vpack.c.b16 %v543, %v541
  %v588 = vpack.c.b16 %v544, %v542
  %v589 = vpack.c.b16 %v547, %v545
  %v590 = vpack.c.b16 %v548, %v546
  %v591 = vpack.c.b16 %v551, %v549
  %v592 = vpack.c.b16 %v552, %v550
  %v593 = vpack.c.b16 %v555, %v553
  %v594 = vpack.c.b16 %v556, %v554
  %v595 = vpack.c.b16 %v559, %v557
  %v596 = vpack.c.b16 %v560, %v558
  %v597 = vpack.c.b16 %v563, %v561
  %v598 = vpack.c.b16 %v564, %v562
  %v599 = vpack.c.b16 %v567, %v565
  %v600 = vpack.c.b16 %v568, %v566
  %633 = vmatprep.subr.bf16.mxu0 %v570
  %634 = vmatpush1.bf16.msra.mxu0 %v569
  %635 = vmatprep.subr.bf16.mxu0 %v572
  %636 = vmatpush1.bf16.msra.mxu0 %v571
  %637 = vmatprep.subr.bf16.mxu0 %v574
  %638 = vmatpush1.bf16.msra.mxu0 %v573
  %639 = vmatprep.subr.bf16.mxu0 %v576
  %640 = vmatpush1.bf16.msra.mxu0 %v575
  %641 = vmatprep.subr.bf16.mxu0 %v578
  %642 = vmatpush1.bf16.msra.mxu0 %v577
  %643 = vmatprep.subr.bf16.mxu0 %v580
  %644 = vmatpush1.bf16.msra.mxu0 %v579
  %645 = vmatprep.subr.bf16.mxu0 %v582
  %646 = vmatpush1.bf16.msra.mxu0 %v581
  %647 = vmatprep.subr.bf16.mxu0 %v584
  %648 = vmatpush1.bf16.msra.mxu0 %v583
  %649 = vmatprep.subr.bf16.mxu0 %v586
  %650 = vmatpush1.bf16.msra.mxu0 %v585
  %651 = vmatprep.subr.bf16.mxu0 %v588
  %652 = vmatpush1.bf16.msra.mxu0 %v587
  %653 = vmatprep.subr.bf16.mxu0 %v590
  %654 = vmatpush1.bf16.msra.mxu0 %v589
  %655 = vmatprep.subr.bf16.mxu0 %v592
  %656 = vmatpush1.bf16.msra.mxu0 %v591
  %657 = vmatprep.subr.bf16.mxu0 %v594
  %658 = vmatpush1.bf16.msra.mxu0 %v593
  %659 = vmatprep.subr.bf16.mxu0 %v596
  %660 = vmatpush1.bf16.msra.mxu0 %v595
  %661 = vmatprep.subr.bf16.mxu0 %v598
  %662 = vmatpush1.bf16.msra.mxu0 %v597
  %663 = vmatprep.subr.bf16.mxu0 %v600
  %664 = vmatpush1.bf16.msra.mxu0 %v599
  %665 = vmatprep.mubr.bf16.mxu0 %v179
  %666 = vmatmul.mubr.bf16.gmra.mrb[0].mxu0 %v178
  %v667 = vpop.f32.mrb[0].mxu0
  %v668 = vadd.f32 %v466, %v667
  %v669 = vpop.f32.mrb[0].mxu0
  %v670 = vadd.f32 %v470, %v669
  %v671 = vpop.f32.mrb[0].mxu0
  %v672 = vpop.f32.mrb[0].mxu0
  %673 = vdwg.mxu0
  %v674 = vmax.f32 %v668, 0.0
  %v675 = vmax.f32 %v670, 0.0
  %v676 = vpack.c.bf16 %v674, %v674
  %v677 = vpack.c.bf16 %v675, %v675
  %v678 = vld [vmem:[%s7] sm:$0xf]
  %v679 = vld [vmem:[%s7 + $0x4] sm:$0xf]
  %v680 = vld [vmem:[%s7 + $0x8] sm:$0xf]
  %v681 = vld [vmem:[%s7 + $0xc] sm:$0xf]
  %v682 = vld [vmem:[%s7 + $0x10] sm:$0xf]
  %v683 = vld [vmem:[%s7 + $0x14] sm:$0xf]
  %v684 = vld [vmem:[%s7 + $0x18] sm:$0xf]
  %v685 = vld [vmem:[%s7 + $0x1c] sm:$0xf]
  %v686 = vld [vmem:[%s7 + $0x20] sm:$0xf]
  %v687 = vld [vmem:[%s7 + $0x24] sm:$0xf]
  %v688 = vld [vmem:[%s7 + $0x28] sm:$0xf]
  %v689 = vld [vmem:[%s7 + $0x2c] sm:$0xf]
  %v690 = vld [vmem:[%s7 + $0x30] sm:$0xf]
  %v691 = vld [vmem:[%s7 + $0x34] sm:$0xf]
  %v692 = vld [vmem:[%s7 + $0x38] sm:$0xf]
  %v693 = vld [vmem:[%s7 + $0x3c] sm:$0xf]
  %v694 = vld [vmem:[%s7 + $0x40] sm:$0xf]
  %v695 = vld [vmem:[%s7 + $0x44] sm:$0xf]
  %v696 = vld [vmem:[%s7 + $0x48] sm:$0xf]
  %v697 = vld [vmem:[%s7 + $0x4c] sm:$0xf]
  %v698 = vld [vmem:[%s7 + $0x50] sm:$0xf]
  %v699 = vld [vmem:[%s7 + $0x54] sm:$0xf]
  %v700 = vld [vmem:[%s7 + $0x58] sm:$0xf]
  %v701 = vld [vmem:[%s7 + $0x5c] sm:$0xf]
  %v702 = vld [vmem:[%s7 + $0x60] sm:$0xf]
  %v703 = vld [vmem:[%s7 + $0x64] sm:$0xf]
  %v704 = vld [vmem:[%s7 + $0x68] sm:$0xf]
  %v705 = vld [vmem:[%s7 + $0x6c] sm:$0xf]
  %v706 = vld [vmem:[%s7 + $0x70] sm:$0xf]
  %v707 = vld [vmem:[%s7 + $0x74] sm:$0xf]
  %v708 = vld [vmem:[%s7 + $0x78] sm:$0xf]
  %v709 = vld [vmem:[%s7 + $0x7c] sm:$0xf]
  %v710 = vld [vmem:[%s8] sm:$0x1]
  %v712 = vlaneseq
  %v713 = vshrl.u32 %v712, 7
  %v714 = vsub.s32 0, %v713
  %v715 = vrot.slane %v710, %v714
  %v749 = vunpack.c.l.b16 %v678
  %v750 = vunpack.c.l.b16 %v679
  %v751 = vunpack.c.l.b16 %v680
  %v752 = vunpack.c.l.b16 %v681
  %v753 = vunpack.c.l.b16 %v682
  %v754 = vunpack.c.l.b16 %v683
  %v755 = vunpack.c.l.b16 %v684
  %v756 = vunpack.c.l.b16 %v685
  %v757 = vunpack.c.l.b16 %v686
  %v758 = vunpack.c.l.b16 %v687
  %v759 = vunpack.c.l.b16 %v688
  %v760 = vunpack.c.l.b16 %v689
  %v761 = vunpack.c.l.b16 %v690
  %v762 = vunpack.c.l.b16 %v691
  %v763 = vunpack.c.l.b16 %v692
  %v764 = vunpack.c.l.b16 %v693
  %v765 = vunpack.c.l.b16 %v694
  %v766 = vunpack.c.l.b16 %v695
  %v767 = vunpack.c.l.b16 %v696
  %v768 = vunpack.c.l.b16 %v697
  %v769 = vunpack.c.l.b16 %v698
  %v770 = vunpack.c.l.b16 %v699
  %v771 = vunpack.c.l.b16 %v700
  %v772 = vunpack.c.l.b16 %v701
  %v773 = vunpack.c.l.b16 %v702
  %v774 = vunpack.c.l.b16 %v703
  %v775 = vunpack.c.l.b16 %v704
  %v776 = vunpack.c.l.b16 %v705
  %v777 = vunpack.c.l.b16 %v706
  %v778 = vunpack.c.l.b16 %v707
  %v779 = vunpack.c.l.b16 %v708
  %v780 = vunpack.c.l.b16 %v709
  %v781 = vpack.c.b16 %v750, %v749
  %v782 = vpack.c.b16 %v752, %v751
  %v783 = vpack.c.b16 %v754, %v753
  %v784 = vpack.c.b16 %v756, %v755
  %v785 = vpack.c.b16 %v758, %v757
  %v786 = vpack.c.b16 %v760, %v759
  %v787 = vpack.c.b16 %v762, %v761
  %v788 = vpack.c.b16 %v764, %v763
  %v789 = vpack.c.b16 %v766, %v765
  %v790 = vpack.c.b16 %v768, %v767
  %v791 = vpack.c.b16 %v770, %v769
  %v792 = vpack.c.b16 %v772, %v771
  %v793 = vpack.c.b16 %v774, %v773
  %v794 = vpack.c.b16 %v776, %v775
  %v795 = vpack.c.b16 %v778, %v777
  %v796 = vpack.c.b16 %v780, %v779
  %813 = vmatprep.subr.bf16.mxu0 0
  %814 = vmatpush1.bf16.msra.mxu0 %v781
  %815 = vmatprep.subr.bf16.mxu0 0
  %816 = vmatpush1.bf16.msra.mxu0 %v782
  %817 = vmatprep.subr.bf16.mxu0 0
  %818 = vmatpush1.bf16.msra.mxu0 %v783
  %819 = vmatprep.subr.bf16.mxu0 0
  %820 = vmatpush1.bf16.msra.mxu0 %v784
  %821 = vmatprep.subr.bf16.mxu0 0
  %822 = vmatpush1.bf16.msra.mxu0 %v785
  %823 = vmatprep.subr.bf16.mxu0 0
  %824 = vmatpush1.bf16.msra.mxu0 %v786
  %825 = vmatprep.subr.bf16.mxu0 0
  %826 = vmatpush1.bf16.msra.mxu0 %v787
  %827 = vmatprep.subr.bf16.mxu0 0
  %828 = vmatpush1.bf16.msra.mxu0 %v788
  %829 = vmatprep.subr.bf16.mxu0 0
  %830 = vmatpush1.bf16.msra.mxu0 %v789
  %831 = vmatprep.subr.bf16.mxu0 0
  %832 = vmatpush1.bf16.msra.mxu0 %v790
  %833 = vmatprep.subr.bf16.mxu0 0
  %834 = vmatpush1.bf16.msra.mxu0 %v791
  %835 = vmatprep.subr.bf16.mxu0 0
  %836 = vmatpush1.bf16.msra.mxu0 %v792
  %837 = vmatprep.subr.bf16.mxu0 0
  %838 = vmatpush1.bf16.msra.mxu0 %v793
  %839 = vmatprep.subr.bf16.mxu0 0
  %840 = vmatpush1.bf16.msra.mxu0 %v794
  %841 = vmatprep.subr.bf16.mxu0 0
  %842 = vmatpush1.bf16.msra.mxu0 %v795
  %843 = vmatprep.subr.bf16.mxu0 0
  %844 = vmatpush1.bf16.msra.mxu0 %v796
  %845 = vmatprep.mubr.bf16.mxu0 %v428
  %846 = vmatmul.mubr.bf16.gmra.mrb[0].mxu0 %v427
  %v847 = vpop.f32.mrb[0].mxu0
  %v848 = vadd.f32 %v715, %v847
  %v849 = vpop.f32.mrb[0].mxu0
  %v850 = vpop.f32.mrb[0].mxu0
  %v851 = vpop.f32.mrb[0].mxu0
  %852 = vdwg.mxu0
  %v853 = vld [vmem:[%s9] sm:$0xf]
  %v854 = vld [vmem:[%s9 + $0x4] sm:$0xf]
  %v855 = vld [vmem:[%s9 + $0x8] sm:$0xf]
  %v856 = vld [vmem:[%s9 + $0xc] sm:$0xf]
  %v857 = vld [vmem:[%s9 + $0x10] sm:$0xf]
  %v858 = vld [vmem:[%s9 + $0x14] sm:$0xf]
  %v859 = vld [vmem:[%s9 + $0x18] sm:$0xf]
  %v860 = vld [vmem:[%s9 + $0x1c] sm:$0xf]
  %v861 = vld [vmem:[%s9 + $0x20] sm:$0xf]
  %v862 = vld [vmem:[%s9 + $0x24] sm:$0xf]
  %v863 = vld [vmem:[%s9 + $0x28] sm:$0xf]
  %v864 = vld [vmem:[%s9 + $0x2c] sm:$0xf]
  %v865 = vld [vmem:[%s9 + $0x30] sm:$0xf]
  %v866 = vld [vmem:[%s9 + $0x34] sm:$0xf]
  %v867 = vld [vmem:[%s9 + $0x38] sm:$0xf]
  %v868 = vld [vmem:[%s9 + $0x3c] sm:$0xf]
  %v869 = vld [vmem:[%s9 + $0x40] sm:$0xf]
  %v870 = vld [vmem:[%s9 + $0x44] sm:$0xf]
  %v871 = vld [vmem:[%s9 + $0x48] sm:$0xf]
  %v872 = vld [vmem:[%s9 + $0x4c] sm:$0xf]
  %v873 = vld [vmem:[%s9 + $0x50] sm:$0xf]
  %v874 = vld [vmem:[%s9 + $0x54] sm:$0xf]
  %v875 = vld [vmem:[%s9 + $0x58] sm:$0xf]
  %v876 = vld [vmem:[%s9 + $0x5c] sm:$0xf]
  %v877 = vld [vmem:[%s9 + $0x60] sm:$0xf]
  %v878 = vld [vmem:[%s9 + $0x64] sm:$0xf]
  %v879 = vld [vmem:[%s9 + $0x68] sm:$0xf]
  %v880 = vld [vmem:[%s9 + $0x6c] sm:$0xf]
  %v881 = vld [vmem:[%s9 + $0x70] sm:$0xf]
  %v882 = vld [vmem:[%s9 + $0x74] sm:$0xf]
  %v883 = vld [vmem:[%s9 + $0x78] sm:$0xf]
  %v884 = vld [vmem:[%s9 + $0x7c] sm:$0xf]
  %v885 = vld [vmem:[%s10] sm:$0x1]
  %v887 = vlaneseq
  %v888 = vshrl.u32 %v887, 7
  %v889 = vsub.s32 0, %v888
  %v890 = vrot.slane %v885, %v889
  %v924 = vunpack.c.l.b16 %v853
  %v925 = vunpack.c.l.b16 %v854
  %v926 = vunpack.c.l.b16 %v855
  %v927 = vunpack.c.l.b16 %v856
  %v928 = vunpack.c.l.b16 %v857
  %v929 = vunpack.c.l.b16 %v858
  %v930 = vunpack.c.l.b16 %v859
  %v931 = vunpack.c.l.b16 %v860
  %v932 = vunpack.c.l.b16 %v861
  %v933 = vunpack.c.l.b16 %v862
  %v934 = vunpack.c.l.b16 %v863
  %v935 = vunpack.c.l.b16 %v864
  %v936 = vunpack.c.l.b16 %v865
  %v937 = vunpack.c.l.b16 %v866
  %v938 = vunpack.c.l.b16 %v867
  %v939 = vunpack.c.l.b16 %v868
  %v940 = vunpack.c.l.b16 %v869
  %v941 = vunpack.c.l.b16 %v870
  %v942 = vunpack.c.l.b16 %v871
  %v943 = vunpack.c.l.b16 %v872
  %v944 = vunpack.c.l.b16 %v873
  %v945 = vunpack.c.l.b16 %v874
  %v946 = vunpack.c.l.b16 %v875
  %v947 = vunpack.c.l.b16 %v876
  %v948 = vunpack.c.l.b16 %v877
  %v949 = vunpack.c.l.b16 %v878
  %v950 = vunpack.c.l.b16 %v879
  %v951 = vunpack.c.l.b16 %v880
  %v952 = vunpack.c.l.b16 %v881
  %v953 = vunpack.c.l.b16 %v882
  %v954 = vunpack.c.l.b16 %v883
  %v955 = vunpack.c.l.b16 %v884
  %v956 = vpack.c.b16 %v925, %v924
  %v957 = vpack.c.b16 %v927, %v926
  %v958 = vpack.c.b16 %v929, %v928
  %v959 = vpack.c.b16 %v931, %v930
  %v960 = vpack.c.b16 %v933, %v932
  %v961 = vpack.c.b16 %v935, %v934
  %v962 = vpack.c.b16 %v937, %v936
  %v963 = vpack.c.b16 %v939, %v938
  %v964 = vpack.c.b16 %v941, %v940
  %v965 = vpack.c.b16 %v943, %v942
  %v966 = vpack.c.b16 %v945, %v944
  %v967 = vpack.c.b16 %v947, %v946
  %v968 = vpack.c.b16 %v949, %v948
  %v969 = vpack.c.b16 %v951, %v950
  %v970 = vpack.c.b16 %v953, %v952
  %v971 = vpack.c.b16 %v955, %v954
  %988 = vmatprep.subr.bf16.mxu0 0
  %989 = vmatpush1.bf16.msra.mxu0 %v956
  %990 = vmatprep.subr.bf16.mxu0 0
  %991 = vmatpush1.bf16.msra.mxu0 %v957
  %992 = vmatprep.subr.bf16.mxu0 0
  %993 = vmatpush1.bf16.msra.mxu0 %v958
  %994 = vmatprep.subr.bf16.mxu0 0
  %995 = vmatpush1.bf16.msra.mxu0 %v959
  %996 = vmatprep.subr.bf16.mxu0 0
  %997 = vmatpush1.bf16.msra.mxu0 %v960
  %998 = vmatprep.subr.bf16.mxu0 0
  %999 = vmatpush1.bf16.msra.mxu0 %v961
  %1000 = vmatprep.subr.bf16.mxu0 0
  %1001 = vmatpush1.bf16.msra.mxu0 %v962
  %1002 = vmatprep.subr.bf16.mxu0 0
  %1003 = vmatpush1.bf16.msra.mxu0 %v963
  %1004 = vmatprep.subr.bf16.mxu0 0
  %1005 = vmatpush1.bf16.msra.mxu0 %v964
  %1006 = vmatprep.subr.bf16.mxu0 0
  %1007 = vmatpush1.bf16.msra.mxu0 %v965
  %1008 = vmatprep.subr.bf16.mxu0 0
  %1009 = vmatpush1.bf16.msra.mxu0 %v966
  %1010 = vmatprep.subr.bf16.mxu0 0
  %1011 = vmatpush1.bf16.msra.mxu0 %v967
  %1012 = vmatprep.subr.bf16.mxu0 0
  %1013 = vmatpush1.bf16.msra.mxu0 %v968
  %1014 = vmatprep.subr.bf16.mxu0 0
  %1015 = vmatpush1.bf16.msra.mxu0 %v969
  %1016 = vmatprep.subr.bf16.mxu0 0
  %1017 = vmatpush1.bf16.msra.mxu0 %v970
  %1018 = vmatprep.subr.bf16.mxu0 0
  %1019 = vmatpush1.bf16.msra.mxu0 %v971
  %1020 = vmatprep.mubr.bf16.mxu0 %v677
  %1021 = vmatmul.mubr.bf16.gmra.mrb[0].mxu0 %v676
  %v1022 = vpop.f32.mrb[0].mxu0
  %v1023 = vadd.f32 %v890, %v1022
  %v1024 = vpop.f32.mrb[0].mxu0
  %v1025 = vpop.f32.mrb[0].mxu0
  %v1026 = vpop.f32.mrb[0].mxu0
  %1027 = vdwg.mxu0
  %1028 = vst [vmem:[%s11] sm:$0xff] %v848
  %v1029 = vmax.f32 %v1023, 1e-06
  %v1030 = vmin.f32 %v1029, 1.0
  %1031 = vst [vmem:[%s11 + $0x8] sm:$0xff] %v1030
  // Predicated region
  $region46: #{_sac_actor_forward_impl.1} parent=0 // pred_check
    _
  $region47: #{_sac_actor_forward_impl.1} parent=0 // pred_check_branch
    %1033 = sbr.rel (0) target = $region49
  $region48: #{_sac_actor_forward_impl.1} parent=0 // pred_region
    _
  $region49: #{_sac_actor_forward_impl.1} parent=0 // pred_fallthru
    _
  // Predicated region
  $region50: #{_sac_actor_forward_impl.1} parent=0 // pred_check
    _
  $region51: #{_sac_actor_forward_impl.1} parent=0 // pred_check_branch
    %1035 = sbr.rel (0) target = $region53
  $region52: #{_sac_actor_forward_impl.1} parent=0 // pred_region
    _
  $region53: #{_sac_actor_forward_impl.1} parent=0 // pred_fallthru
    _

</llo_original>
